<compile_context>
chip_gen: v5e
topology: v5e:2x2
jax: 0.10.0
libtpu: 0.0.40
codegen_flags: <defaults>
</compile_context>

<pallas_src>
import jax
import jax.numpy as jnp
from jax.experimental import pallas as pl
from jax.experimental.pallas import tpu as pltpu


def _sigmoid(x):
    # Plain formula, numerically safe in f32 (exp overflow -> inf -> 0); used identically
    # in the kernel and the pure-JAX reference.
    return 1.0 / (1.0 + jnp.exp(-x))


def _structure_loss_kernel(pred_ref, mask_ref, out_ref, inter_acc, union_acc):
    # pred_ref / mask_ref : (1, C, T_HW) VMEM blocks (native dtype, upcast below)
    # out_ref             : (1, 1, C) f32, written once at the last reduction step
    # inter_acc/union_acc : (1, C) f32 VMEM scratch accumulators
    k = pl.program_id(1)

    @pl.when(k == 0)
    def _():
        inter_acc[...] = jnp.zeros_like(inter_acc)
        union_acc[...] = jnp.zeros_like(union_acc)

    p = _sigmoid(pred_ref[...].astype(jnp.float32))   # (1, C, T_HW)
    m = mask_ref[...].astype(jnp.float32)             # (1, C, T_HW)

    inter_acc[...] += jnp.sum(p * m, axis=-1)          # (1, C)
    union_acc[...] += jnp.sum(p + m, axis=-1)          # (1, C)

    @pl.when(k == pl.num_programs(1) - 1)
    def _():
        inter = inter_acc[...]
        union = union_acc[...]
        out_ref[0] = 1.0 - inter / (union - inter)     # (1, C) store into (1, 1, C) block


def _choose_hw_tile(hw, c, itemsize=4, budget_bytes=2 * 1024 * 1024):
    """Largest multiple-of-128 divisor of hw whose (1, c, t) tile fits the VMEM budget."""
    if hw % 128 != 0:
        return hw  # block dim equals full array dim -> no (8,128) constraint issue
    max_elems = max(128, (budget_bytes // (c * itemsize)) // 128 * 128)
    t = min(hw, max_elems)
    while hw % t != 0:
        t -= 128
    return t


def _interp_matrix(out_size, in_size, dtype=jnp.float32):
    """(out_size, in_size) 1-D linear interpolation matrix, align_corners=True."""
    if in_size == out_size:
        return jnp.eye(out_size, dtype=dtype)
    if in_size == 1:
        return jnp.ones((out_size, 1), dtype=dtype)
    if out_size == 1:
        return jax.nn.one_hot(jnp.zeros((1,), jnp.int32), in_size, dtype=dtype)
    src = jnp.arange(out_size, dtype=jnp.float32) * ((in_size - 1) / (out_size - 1))
    lo = jnp.clip(jnp.floor(src).astype(jnp.int32), 0, in_size - 2)
    frac = src - lo.astype(jnp.float32)
    return ((1.0 - frac)[:, None] * jax.nn.one_hot(lo, in_size, dtype=jnp.float32)
            + frac[:, None] * jax.nn.one_hot(lo + 1, in_size, dtype=jnp.float32)
            ).astype(dtype)


def _resize_bilinear_align_corners(x, out_hw):
    """F.interpolate(x, size=out_hw, mode='bilinear', align_corners=True) for NCHW x."""
    # TODO(synk): the bilinear resize runs in the JAX wrapper (separable einsum), not in-kernel.
    _, _, h, w = x.shape
    ho, wo = out_hw
    if (h, w) == (ho, wo):
        return x
    a_h = _interp_matrix(ho, h)
    a_w = _interp_matrix(wo, w)
    return jnp.einsum("hH,wW,bcHW->bchw", a_h, a_w, x.astype(jnp.float32))


def structure_loss(pred, mask):
    """pred: (B, C, H, W) logits; mask: (B, C, Hm, Wm). Returns (B, C) weighted IoU."""
    B, C, H, W = pred.shape
    mask_r = _resize_bilinear_align_corners(mask, (H, W))

    HW = H * W
    pred_f = pred.reshape(B, C, HW)      # no dtype promotion in the wrapper
    mask_f = mask_r.reshape(B, C, HW)

    t_hw = _choose_hw_tile(HW, C)
    grid = (B, HW // t_hw)

    bytes_in = (pred_f.size * pred_f.dtype.itemsize
                + mask_f.size * mask_f.dtype.itemsize)
    cost = pl.CostEstimate(
        flops=int(6 * B * C * HW),
        transcendentals=int(B * C * HW),          # one exp per element (sigmoid)
        bytes_accessed=int(bytes_in + B * C * 4),
    )

    out = pl.pallas_call(
        _structure_loss_kernel,
        out_shape=jax.ShapeDtypeStruct((B, 1, C), jnp.float32),
        grid_spec=pltpu.PrefetchScalarGridSpec(
            num_scalar_prefetch=0,
            grid=grid,
            in_specs=[
                pl.BlockSpec((1, C, t_hw), lambda b, k: (b, 0, k)),
                pl.BlockSpec((1, C, t_hw), lambda b, k: (b, 0, k)),
            ],
            out_specs=pl.BlockSpec((1, 1, C), lambda b, k: (b, 0, 0)),
            scratch_shapes=[
                pltpu.VMEM((1, C), jnp.float32),
                pltpu.VMEM((1, C), jnp.float32),
            ],
        ),
        compiler_params=pltpu.CompilerParams(
            dimension_semantics=("parallel", "arbitrary"),
        ),
        cost_estimate=cost,
    )(pred_f, mask_f)
    return out.reshape(B, C)


def _structure_loss_ref(pred, mask):
    """Pure-JAX reference mirroring the PyTorch forward."""
    B, C, H, W = pred.shape
    m = _resize_bilinear_align_corners(mask, (H, W)).astype(jnp.float32)
    p = _sigmoid(pred.astype(jnp.float32))
    inter = jnp.sum(p * m, axis=(2, 3))
    union = jnp.sum(p + m, axis=(2, 3))
    return 1.0 - inter / (union - inter)


if __name__ == "__main__":
    key = jax.random.PRNGKey(0)
    k1, k2 = jax.random.split(key)
    B, C, H, W = 2, 4, 16, 16
    # pred: raw logits; mask: binary mask at half resolution (exercises the
    # bilinear align_corners=True resize path of the wrapper).
    pred = jax.random.normal(k1, (B, C, H, W), dtype=jnp.float32)
    mask = (jax.random.uniform(k2, (B, C, H // 2, W // 2)) > 0.5).astype(jnp.float32)

    out = structure_loss(pred, mask)
    jax.block_until_ready(out)

    ref = _structure_loss_ref(pred, mask)
    assert out.shape == (B, C), out.shape
    assert jnp.allclose(out, ref, rtol=1e-5, atol=1e-5), (out, ref)

    print("KERNEL_OK")
</pallas_src>

<mosaic_0001>
module attributes {stable_mosaic.version = 11 : i64} {
  func.func @_structure_loss_kernel(%arg0: i32, %arg1: i32, %arg2: memref<1x4x256xf32, #tpu.memory_space<vmem>>, %arg3: memref<1x4x256xf32, #tpu.memory_space<vmem>>, %arg4: memref<1x1x4xf32, #tpu.memory_space<vmem>>, %arg5: memref<1x4xf32, #tpu.memory_space<vmem>>, %arg6: memref<1x4xf32, #tpu.memory_space<vmem>>) attributes {dimension_semantics = [#tpu.dimension_semantics<parallel>, #tpu.dimension_semantics<arbitrary>], iteration_bounds = array<i64: 2, 1>, scalar_prefetch = 0 : i64, scratch_operands = 2 : i64, tpu.core_type = #tpu.core_type<tc>, window_params = [{transform_indices = @transform_0, window_bounds = array<i64: 1, 4, 256>}, {transform_indices = @transform_1, window_bounds = array<i64: 1, 4, 256>}, {transform_indices = @transform_2, window_bounds = array<i64: 1, 1, 4>}]} {
    %c0_i32 = arith.constant 0 : i32
    %0 = arith.cmpi eq, %arg1, %c0_i32 : i32
    %1 = arith.extui %0 : i1 to i32
    %c0_i32_0 = arith.constant 0 : i32
    %2 = arith.cmpi ne, %1, %c0_i32_0 : i32
    scf.if %2 {
      %cst_20 = arith.constant 0.000000e+00 : f32
      %25 = vector.broadcast %cst_20 : f32 to vector<1x4xf32>
      %c0_21 = arith.constant 0 : index
      %c0_22 = arith.constant 0 : index
      %26 = vector.load %arg5[%c0_21, %c0_22] : memref<1x4xf32, #tpu.memory_space<vmem>>, vector<1x4xf32>
      tpu.vector_store %arg5[%c0_21, %c0_22], %25 {strides = array<i32>} : memref<1x4xf32, #tpu.memory_space<vmem>>, vector<1x4xf32>,
      %cst_23 = arith.constant 0.000000e+00 : f32
      %27 = vector.broadcast %cst_23 : f32 to vector<1x4xf32>
      %c0_24 = arith.constant 0 : index
      %c0_25 = arith.constant 0 : index
      %28 = vector.load %arg6[%c0_24, %c0_25] : memref<1x4xf32, #tpu.memory_space<vmem>>, vector<1x4xf32>
      tpu.vector_store %arg6[%c0_24, %c0_25], %27 {strides = array<i32>} : memref<1x4xf32, #tpu.memory_space<vmem>>, vector<1x4xf32>,
    } else {
    }
    %c0 = arith.constant 0 : index
    %c0_1 = arith.constant 0 : index
    %c0_2 = arith.constant 0 : index
    %3 = vector.load %arg2[%c0, %c0_1, %c0_2] : memref<1x4x256xf32, #tpu.memory_space<vmem>>, vector<1x4x256xf32>
    %cst = arith.constant 0.000000e+00 : f32
    %4 = vector.broadcast %cst : f32 to vector<1x4x256xf32>
    %5 = arith.subf %4, %3 : vector<1x4x256xf32>
    %6 = math.exp %5 : vector<1x4x256xf32>
    %cst_3 = arith.constant 1.000000e+00 : f32
    %7 = vector.broadcast %cst_3 : f32 to vector<1x4x256xf32>
    %8 = arith.addf %7, %6 : vector<1x4x256xf32>
    %cst_4 = arith.constant 1.000000e+00 : f32
    %9 = vector.broadcast %cst_4 : f32 to vector<1x4x256xf32>
    %10 = arith.divf %9, %8 : vector<1x4x256xf32>
    %c0_5 = arith.constant 0 : index
    %c0_6 = arith.constant 0 : index
    %c0_7 = arith.constant 0 : index
    %11 = vector.load %arg3[%c0_5, %c0_6, %c0_7] : memref<1x4x256xf32, #tpu.memory_space<vmem>>, vector<1x4x256xf32>
    %c0_8 = arith.constant 0 : index
    %c0_9 = arith.constant 0 : index
    %12 = vector.load %arg5[%c0_8, %c0_9] : memref<1x4xf32, #tpu.memory_space<vmem>>, vector<1x4xf32>
    %13 = arith.mulf %10, %11 : vector<1x4x256xf32>
    %cst_10 = arith.constant dense<0.000000e+00> : vector<1x4xf32>
    %14 = vector.multi_reduction <add>, %13, %cst_10 [2] : vector<1x4x256xf32> to vector<1x4xf32>
    %15 = arith.addf %12, %14 : vector<1x4xf32>
    %c0_11 = arith.constant 0 : index
    %c0_12 = arith.constant 0 : index
    %16 = vector.load %arg5[%c0_11, %c0_12] : memref<1x4xf32, #tpu.memory_space<vmem>>, vector<1x4xf32>
    tpu.vector_store %arg5[%c0_11, %c0_12], %15 {strides = array<i32>} : memref<1x4xf32, #tpu.memory_space<vmem>>, vector<1x4xf32>,
    %c0_13 = arith.constant 0 : index
    %c0_14 = arith.constant 0 : index
    %17 = vector.load %arg6[%c0_13, %c0_14] : memref<1x4xf32, #tpu.memory_space<vmem>>, vector<1x4xf32>
    %18 = arith.addf %10, %11 : vector<1x4x256xf32>
    %cst_15 = arith.constant dense<0.000000e+00> : vector<1x4xf32>
    %19 = vector.multi_reduction <add>, %18, %cst_15 [2] : vector<1x4x256xf32> to vector<1x4xf32>
    %20 = arith.addf %17, %19 : vector<1x4xf32>
    %c0_16 = arith.constant 0 : index
    %c0_17 = arith.constant 0 : index
    %21 = vector.load %arg6[%c0_16, %c0_17] : memref<1x4xf32, #tpu.memory_space<vmem>>, vector<1x4xf32>
    tpu.vector_store %arg6[%c0_16, %c0_17], %20 {strides = array<i32>} : memref<1x4xf32, #tpu.memory_space<vmem>>, vector<1x4xf32>,
    %c0_i32_18 = arith.constant 0 : i32
    %22 = arith.cmpi eq, %arg1, %c0_i32_18 : i32
    %23 = arith.extui %22 : i1 to i32
    %c0_i32_19 = arith.constant 0 : i32
    %24 = arith.cmpi ne, %23, %c0_i32_19 : i32
    scf.if %24 {
      %c0_20 = arith.constant 0 : index
      %c0_21 = arith.constant 0 : index
      %25 = vector.load %arg5[%c0_20, %c0_21] : memref<1x4xf32, #tpu.memory_space<vmem>>, vector<1x4xf32>
      %c0_22 = arith.constant 0 : index
      %c0_23 = arith.constant 0 : index
      %26 = vector.load %arg6[%c0_22, %c0_23] : memref<1x4xf32, #tpu.memory_space<vmem>>, vector<1x4xf32>
      %27 = arith.subf %26, %25 : vector<1x4xf32>
      %28 = arith.divf %25, %27 : vector<1x4xf32>
      %cst_24 = arith.constant 1.000000e+00 : f32
      %29 = vector.broadcast %cst_24 : f32 to vector<1x4xf32>
      %30 = arith.subf %29, %28 : vector<1x4xf32>
      %c0_25 = arith.constant 0 : index
      %c0_26 = arith.constant 0 : index
      %c0_27 = arith.constant 0 : index
      %31 = vector.load %arg4[%c0_25, %c0_26, %c0_27] : memref<1x1x4xf32, #tpu.memory_space<vmem>>, vector<1x1x4xf32>
      %32 = vector.shape_cast %31 : vector<1x1x4xf32> to vector<1x4xf32>
      %33 = vector.shape_cast %30 : vector<1x4xf32> to vector<1x1x4xf32>
      tpu.vector_store %arg4[%c0_25, %c0_26, %c0_27], %33 {strides = array<i32>} : memref<1x1x4xf32, #tpu.memory_space<vmem>>, vector<1x1x4xf32>,
    } else {
    }
    return
  }
  func.func @transform_0(%arg0: i32, %arg1: i32) -> (i32, i32, i32) {
    %c0_i32 = arith.constant 0 : i32
    %c0_i32_0 = arith.constant 0 : i32
    return %arg0, %c0_i32, %arg1 : i32, i32, i32
  }
  func.func @transform_1(%arg0: i32, %arg1: i32) -> (i32, i32, i32) {
    %c0_i32 = arith.constant 0 : i32
    %c0_i32_0 = arith.constant 0 : i32
    return %arg0, %c0_i32, %arg1 : i32, i32, i32
  }
  func.func @transform_2(%arg0: i32, %arg1: i32) -> (i32, i32, i32) {
    %c0_i32 = arith.constant 0 : i32
    %c0_i32_0 = arith.constant 0 : i32
    %c0_i32_1 = arith.constant 0 : i32
    return %arg0, %c0_i32, %c0_i32_0 : i32, i32, i32
  }
}

</mosaic_0001>

<llo_original>
// kernel: tpu_custom_call.1
$region0: #{tpu_custom_call.1}
  #allocation0 [shape = 'u32[]', space=smem, size = 0x4, offset = 0x4, fixed_abs, tag = 'smem constant byte address 0x4 - core index']
  #allocation1 [shape = 'u32[72,128]{1,0:T(1,128)}', space=vmem, size = 0x9000, scoped, tag = 'internal scratch']
  #allocation2 [shape = 'f32[1,4]{1,0:T(1,128)}', space=vmem, size = 0x200, scoped, tag = 'scratch operand']
  #allocation3 [shape = 'f32[1,4]{1,0:T(1,128)}', space=vmem, size = 0x200, scoped, tag = 'scratch operand']
  %s0 = inlined_call_operand.hbm [shape: f32[2,4,256], index: 0, kind: input, shape index: {}]
  %s1 = inlined_call_operand.hbm [shape: f32[2,4,256], index: 1, kind: input, shape index: {}]
  %s2 = inlined_call_operand.hbm [shape: f32[2,1,4], index: 2, kind: output, shape index: {}]
  %s3 = sld [smem:[#allocation0]]
  $region57: #{tpu_custom_call.1} parent=0
    _
  %s5 = ssub.s32 1, %s3
  %s6 = scalar_select 0, %s5, %s3
  $region1: #{tpu_custom_call.1} parent=0
    #allocation4 [shape = 'u8[8192]{0}', space=vmem, size = 0x2000, scoped, tag = 'input window, operand 0']
    #allocation5 [shape = 's32[2]{0}', space=sflag, size = 0x8, scoped, tag = 'scoped memory for tpu_custom_call.1']
    #allocation6 [shape = 's32[2]{0}', space=sflag, size = 0x8, scoped, tag = 'scoped memory for tpu_custom_call.1']
    #allocation7 [shape = 'u8[8192]{0}', space=vmem, size = 0x2000, scoped, tag = 'input window, operand 1']
    #allocation8 [shape = 's32[2]{0}', space=sflag, size = 0x8, scoped, tag = 'scoped memory for tpu_custom_call.1']
    #allocation9 [shape = 'u8[1024]{0}', space=vmem, size = 0x400, scoped, tag = 'output window, operand 0']
    %7 = vsyncpa [#allocation5], 0
    %s8 = scalar_lea.sflag [#allocation5], 1
    %9 = vsyncpa %s8, 0
    %10 = vsyncpa [#allocation8], 0
    %s11 = scalar_lea.sflag [#allocation8], 1
    %12 = vsyncpa %s11, 0
    %13 = vsyncpa [#allocation6], 0
    %s14 = scalar_lea.sflag [#allocation6], 1
    %15 = vsyncpa %s14, 0
    loop: start=0, step=1, limit=4
    $region2: #{tpu_custom_call.1} parent=1 // loop_pre_header
      _
    $region3: #{tpu_custom_call.1} parent=1 // loop_header
      %s17 = sphi 0, %s21
      %p18 = scmp.ge.s32.totalorder %s17, 4
      %s24 = sphi 0, %s36
      %s25 = sphi 0, %s32
      %s26 = sphi 0, %s24
      %s27 = sphi 0, %s25
      %s28 = sphi 0, %s26
      %s29 = sphi 0, %s27
      %s41 = sphi 0, %s43
      %s44 = sphi 0, %s41
      %s45 = sphi 0, %s44
      %s61 = sphi 0, %s45
      %s69 = sphi 0, %s71
      %s72 = sphi 0, %s69
      %s73 = sphi 0, %s72
      %s89 = sphi 0, %s73
      %s95 = sphi 0, %s97
      %s98 = sphi 0, %s95
      %s99 = sphi 0, %s98
      %s115 = sphi 0, %s99
    $region4: #{tpu_custom_call.1} parent=1 // loop_header_branch
      %20 = sbr.rel (%p18) target = $region8
    $region5: #{tpu_custom_call.1} parent=1 // loop_body
      %s22 = ssub.s32 %s17, 1
      %s23 = ssub.s32 %s17, 2
      %s30 = sadd.s32 1, %s25
      %p31 = scmp.ge.s32.totalorder %s30, 1
      %s32 = scalar_select %p31, 0, %s30
      %s33 = sadd.s32 1, %s24
      %s34 = scalar_select %p31, %s33, %s24
      %p35 = scmp.ge.s32.totalorder %s34, 2
      %s36 = scalar_select %p35, 0, %s34
      %s37 = ssub.s32 %s24, %s36
      %s38 = ssub.s32 %s25, %s32
      %s39 = sor.u32 %s37, %s38
      %p40 = scmp.eq.s32.totalorder %s39, 0
      %s42 = sadd.s32 %s41, 1
      %s43 = scalar_select %p40, %s41, %s42
      %p46 = pneg %p40
      %p47 = scmp.eq.s32.totalorder %s17, 1
      %p48 = por %p46, %p47
      %p49 = scmp.ne.s32.totalorder %s41, %s44
      %p50 = scmp.eq.s32.totalorder %s17, 0
      %p51 = por %p49, %p50
      %p52 = scmp.ne.s32.totalorder %s41, %s44
      %p53 = scmp.eq.s32.totalorder %s22, 1
      %p54 = por %p52, %p53
      %p55 = scmp.ne.s32.totalorder %s44, %s45
      %p56 = scmp.eq.s32.totalorder %s22, 0
      %p57 = por %p55, %p56
      %p58 = scmp.ne.s32.totalorder %s44, %s45
      %p59 = scmp.eq.s32.totalorder %s23, 1
      %p60 = por %p58, %p59
      %p62 = scmp.ne.s32.totalorder %s45, %s61
      %p63 = scmp.eq.s32.totalorder %s23, 0
      %p64 = por %p62, %p63
      %s65 = ssub.s32 %s24, %s36
      %s66 = ssub.s32 %s25, %s32
      %s67 = sor.u32 %s65, %s66
      %p68 = scmp.eq.s32.totalorder %s67, 0
      %s70 = sadd.s32 %s69, 1
      %s71 = scalar_select %p68, %s69, %s70
      %p74 = pneg %p68
      %p75 = scmp.eq.s32.totalorder %s17, 1
      %p76 = por %p74, %p75
      %p77 = scmp.ne.s32.totalorder %s69, %s72
      %p78 = scmp.eq.s32.totalorder %s17, 0
      %p79 = por %p77, %p78
      %p80 = scmp.ne.s32.totalorder %s69, %s72
      %p81 = scmp.eq.s32.totalorder %s22, 1
      %p82 = por %p80, %p81
      %p83 = scmp.ne.s32.totalorder %s72, %s73
      %p84 = scmp.eq.s32.totalorder %s22, 0
      %p85 = por %p83, %p84
      %p86 = scmp.ne.s32.totalorder %s72, %s73
      %p87 = scmp.eq.s32.totalorder %s23, 1
      %p88 = por %p86, %p87
      %p90 = scmp.ne.s32.totalorder %s73, %s89
      %p91 = scmp.eq.s32.totalorder %s23, 0
      %p92 = por %p90, %p91
      %s93 = ssub.s32 %s24, %s36
      %p94 = scmp.eq.s32.totalorder %s93, 0
      %s96 = sadd.s32 %s95, 1
      %s97 = scalar_select %p94, %s95, %s96
      %p100 = pneg %p94
      %p101 = scmp.eq.s32.totalorder %s17, 1
      %p102 = por %p100, %p101
      %p103 = scmp.ne.s32.totalorder %s95, %s98
      %p104 = scmp.eq.s32.totalorder %s17, 0
      %p105 = por %p103, %p104
      %p106 = scmp.ne.s32.totalorder %s95, %s98
      %p107 = scmp.eq.s32.totalorder %s22, 1
      %p108 = por %p106, %p107
      %p109 = scmp.ne.s32.totalorder %s98, %s99
      %p110 = scmp.eq.s32.totalorder %s22, 0
      %p111 = por %p109, %p110
      %p112 = scmp.ne.s32.totalorder %s98, %s99
      %p113 = scmp.eq.s32.totalorder %s23, 1
      %p114 = por %p112, %p113
      %p116 = scmp.ne.s32.totalorder %s99, %s115
      %p117 = scmp.eq.s32.totalorder %s23, 0
      %p118 = por %p116, %p117
      %p119 = scmp.le.s32.totalorder 1, %s17
      %p120 = scmp.lt.s32.totalorder %s17, 3
      %p121 = pnand %p119, %p120
      %p122 = pneg %p121
      // Predicated region
      $region9: #{tpu_custom_call.1} parent=5 // pred_check
        _
      $region10: #{tpu_custom_call.1} parent=5 // pred_check_branch
        %124 = sbr.rel (%p121) target = $region12
      $region11: #{tpu_custom_call.1} parent=5 // pred_region
        %s125 = ssub.s32 %s17, 1
      $region12: #{tpu_custom_call.1} parent=5 // pred_fallthru
        _
      %p126 = scmp.lt.s32.totalorder %s17, 2
      // Predicated region
      $region13: #{tpu_custom_call.1} parent=5 // pred_check
        %p127 = pneg %p126
      $region14: #{tpu_custom_call.1} parent=5 // pred_check_branch
        %129 = sbr.rel (%p127) target = $region16
      $region15: #{tpu_custom_call.1} parent=5 // pred_region
        // Predicated region
        $region17: #{tpu_custom_call.1} parent=15 // pred_check
          %p130 = pneg %p51
        $region18: #{tpu_custom_call.1} parent=15 // pred_check_branch
          %132 = sbr.rel (%p130) target = $region20
        $region19: #{tpu_custom_call.1} parent=15 // pred_region
          %s133 = sand.u32 %s41, 1
          %s134 = scalar_lea.sflag [#allocation5], %s133
          %s135 = sand.u32 %s41, 1
          %s136 = smul.addr %s135, 8
          %s137 = scalar_lea.vmem [#allocation4], %s136
          %s138 = smul.u32 2, %s25
          %140 = vsyncadd %s134, 0
          %s141 = smul.addr %s24, 2
          %s142 = sadd.s32 %s138, %s141
          %s143 = smul.addr %s142, 4
          %s144 = scalar_lea.hbm %s0, %s143
          %s146 = sshll.u32 %s144, 4
          %s147 = int_to_ptr.hbm [resolvable:$true] %s146
          %s148 = sshll.u32 %s137, 4
          %s149 = int_to_ptr.vmem [resolvable:$true] %s148
          %151 = dma.hbm_to_vmem [thread:$0]  %s147, 128, %s149, %s134
        $region20: #{tpu_custom_call.1} parent=15 // pred_fallthru
          _
        // Predicated region
        $region21: #{tpu_custom_call.1} parent=15 // pred_check
          %p152 = pneg %p79
        $region22: #{tpu_custom_call.1} parent=15 // pred_check_branch
          %154 = sbr.rel (%p152) target = $region24
        $region23: #{tpu_custom_call.1} parent=15 // pred_region
          %s155 = sand.u32 %s69, 1
          %s156 = scalar_lea.sflag [#allocation8], %s155
          %s157 = sand.u32 %s69, 1
          %s158 = smul.addr %s157, 8
          %s159 = scalar_lea.vmem [#allocation7], %s158
          %s160 = smul.u32 2, %s25
          %162 = vsyncadd %s156, 0
          %s163 = smul.addr %s24, 2
          %s164 = sadd.s32 %s160, %s163
          %s165 = smul.addr %s164, 4
          %s166 = scalar_lea.hbm %s1, %s165
          %s168 = sshll.u32 %s166, 4
          %s169 = int_to_ptr.hbm [resolvable:$true] %s168
          %s170 = sshll.u32 %s159, 4
          %s171 = int_to_ptr.vmem [resolvable:$true] %s170
          %173 = dma.hbm_to_vmem [thread:$0]  %s169, 128, %s171, %s156
        $region24: #{tpu_custom_call.1} parent=15 // pred_fallthru
          _
      $region16: #{tpu_custom_call.1} parent=5 // pred_fallthru
        _
      %p174 = scmp.le.s32.totalorder 1, %s17
      %p175 = scmp.lt.s32.totalorder %s17, 3
      %p176 = pnand %p174, %p175
      %p177 = pneg %p176
      // Predicated region
      $region25: #{tpu_custom_call.1} parent=5 // pred_check
        _
      $region26: #{tpu_custom_call.1} parent=5 // pred_check_branch
        %179 = sbr.rel (%p176) target = $region28
      $region27: #{tpu_custom_call.1} parent=5 // pred_region
        %s180 = ssub.s32 %s17, 1
        %s181 = sand.u32 %s44, 1
        %s182 = scalar_lea.sflag [#allocation5], %s181
        %s183 = sand.u32 %s44, 1
        %s184 = smul.addr %s183, 8
        %s185 = scalar_lea.vmem [#allocation4], %s184
        // Predicated region
        $region29: #{tpu_custom_call.1} parent=27 // pred_check
          %p186 = pneg %p57
        $region30: #{tpu_custom_call.1} parent=27 // pred_check_branch
          %188 = sbr.rel (%p186) target = $region32
        $region31: #{tpu_custom_call.1} parent=27 // pred_region
          %190 = dma.done %s182, 128
        $region32: #{tpu_custom_call.1} parent=27 // pred_fallthru
          _
        %s191 = sand.u32 %s72, 1
        %s192 = scalar_lea.sflag [#allocation8], %s191
        %s193 = sand.u32 %s72, 1
        %s194 = smul.addr %s193, 8
        %s195 = scalar_lea.vmem [#allocation7], %s194
        // Predicated region
        $region33: #{tpu_custom_call.1} parent=27 // pred_check
          %p196 = pneg %p85
        $region34: #{tpu_custom_call.1} parent=27 // pred_check_branch
          %198 = sbr.rel (%p196) target = $region36
        $region35: #{tpu_custom_call.1} parent=27 // pred_region
          %200 = dma.done %s192, 128
        $region36: #{tpu_custom_call.1} parent=27 // pred_fallthru
          _
        %s201 = sand.u32 %s44, 1
        %s202 = scalar_lea.sflag [#allocation5], %s201
        %s203 = sand.u32 %s44, 1
        %s204 = smul.addr %s203, 8
        %s205 = scalar_lea.vmem [#allocation4], %s204
        %p206 = pneg %p57
        %p207 = pneg %p54
        %s208 = sand.u32 %s72, 1
        %s209 = scalar_lea.sflag [#allocation8], %s208
        %s210 = sand.u32 %s72, 1
        %s211 = smul.addr %s210, 8
        %s212 = scalar_lea.vmem [#allocation7], %s211
        %p213 = pneg %p85
        %p214 = pneg %p82
        %p215 = pneg %p111
        %p216 = pneg %p108
        %s217 = sand.u32 %s98, 1
        %s218 = scalar_lea.sflag [#allocation6], %s217
        %s219 = sand.u32 %s98, 1
        %s220 = scalar_lea.vmem [#allocation9], %s219
        %s221 = smul.u32 2, %s27
        %s222 = smul.u32 2, %s27
        %p223 = scmp.eq.s32.totalorder %s27, 0
        // Predicated region
        $region37: #{tpu_custom_call.1} parent=27 // pred_check
          %p224 = pneg %p223
        $region38: #{tpu_custom_call.1} parent=27 // pred_check_branch
          %226 = sbr.rel (%p224) target = $region40
        $region39: #{tpu_custom_call.1} parent=27 // pred_region
          %vm227 = vcmask 24576
          %228 = vst.msk [vmem:[#allocation2] sm:$0x1] %vm227, 0.0
          %229 = vst.msk [vmem:[#allocation3] sm:$0x1] %vm227, 0.0
        $region40: #{tpu_custom_call.1} parent=27 // pred_fallthru
          _
        %v230 = vld [vmem:[%s185] sm:$0xff]
        %v231 = vsub.f32 0.0, %v230
        %v232 = vmul.f32 %v231, 1.442695
        %v233 = vpow.pop %v232
        %v234 = vadd.f32 %v233, 1.0
        %v235 = vrcp.pop %v234
        %v236 = vmul.f32 %v234, %v235
        %v237 = vsub.f32 1.0, %v236
        %v238 = vmul.f32 %v235, %v237
        %v239 = vadd.f32 %v235, %v238
        %vm240 = vweird.f32 %v234
        %vm241 = vweird.f32 %v235
        %vm242 = vmor %vm240, %vm241
        %v243 = vsel %vm242, %v235, %v239
        %v244 = vand.u32 2147483647, %v234
        %vm245 = vcmp.eq.f32.partialorder %v244, 8.507059e+37
        %v246 = vand.u32 %v234, 2147483648
        %v247 = vor.u32 1.1754944e-38, %v246
        %v248 = vsel %vm245, %v247, %v243
        %v249 = vmul.f32 1.0, %v248
        %v250 = vld [vmem:[%s195] sm:$0xff]
        %v251 = vld [vmem:[#allocation2] sm:$0x1]
        %v252 = vmul.f32 %v249, %v250
        %254 = vst [vmem:[#allocation1] ss:$2 sm:$0xff] %v252
        %v255 = vld.sshfl [vmem:[#allocation1] sm:$0xff pattern:$0x75316420]
        %v256 = vld.sshfl [vmem:[#allocation1 + $0x8] sm:$0xff pattern:$0x75316420]
        %vm259 = vcmask 1043456
        %v260 = vsel %vm259, %v255, 0.0
        %v261 = vsel %vm259, %v256, 0.0
        %v262 = vadd.f32 %v260, %v261
        %263 = vadd.xlane.f32.xlu0 %v262
        %v264 = vpop.xlane.xlu0 %263
        %v266 = vperm.slane %v264, 0
        %v267 = vperm.slane %v264, 1
        %v268 = vperm.slane %v264, 2
        %v269 = vperm.slane %v264, 3
        %270 = vst [vmem:[#allocation1] ss:$9 sm:$0xff] %v266
        %s271 = scalar_lea.vmem [#allocation1], 1
        %272 = vst [vmem:[%s271] ss:$9 sm:$0xff] %v267
        %s273 = scalar_lea.vmem [#allocation1], 2
        %274 = vst [vmem:[%s273] ss:$9 sm:$0xff] %v268
        %s275 = scalar_lea.vmem [#allocation1], 3
        %276 = vst [vmem:[%s275] ss:$9 sm:$0xff] %v269
        %v277 = vld [vmem:[#allocation1] sm:$0xff]
        %278 = vset.pattern.permute.xlu0 0
        %279 = vperm.xlu0 %278, %v277
        %v280 = vpop.permute.xlu0 %279
        %v281 = vlaneseq
        %v282 = vand.u32 %v281, 127
        %v283 = vperm.slane %v280, %v282
        %v285 = vadd.f32 %v251, %v283
        %vm286 = vcmask 24576
        %287 = vst.msk [vmem:[#allocation2] sm:$0x1] %vm286, %v285
        %v288 = vld [vmem:[#allocation3] sm:$0x1]
        %v289 = vadd.f32 %v249, %v250
        %291 = vst [vmem:[#allocation1] ss:$2 sm:$0xff] %v289
        %v292 = vld.sshfl [vmem:[#allocation1] sm:$0xff pattern:$0x75316420]
        %v293 = vld.sshfl [vmem:[#allocation1 + $0x8] sm:$0xff pattern:$0x75316420]
        %v296 = vsel %vm259, %v292, 0.0
        %v297 = vsel %vm259, %v293, 0.0
        %v298 = vadd.f32 %v296, %v297
        %299 = vadd.xlane.f32.xlu0 %v298
        %v300 = vpop.xlane.xlu0 %299
        %v302 = vperm.slane %v300, 0
        %v303 = vperm.slane %v300, 1
        %v304 = vperm.slane %v300, 2
        %v305 = vperm.slane %v300, 3
        %306 = vst [vmem:[#allocation1] ss:$9 sm:$0xff] %v302
        %s307 = scalar_lea.vmem [#allocation1], 1
        %308 = vst [vmem:[%s307] ss:$9 sm:$0xff] %v303
        %s309 = scalar_lea.vmem [#allocation1], 2
        %310 = vst [vmem:[%s309] ss:$9 sm:$0xff] %v304
        %s311 = scalar_lea.vmem [#allocation1], 3
        %312 = vst [vmem:[%s311] ss:$9 sm:$0xff] %v305
        %v313 = vld [vmem:[#allocation1] sm:$0xff]
        %314 = vset.pattern.permute.xlu0 0
        %315 = vperm.xlu0 %314, %v313
        %v316 = vpop.permute.xlu0 %315
        %v317 = vperm.slane %v316, %v282
        %v319 = vadd.f32 %v288, %v317
        %320 = vst.msk [vmem:[#allocation3] sm:$0x1] %vm286, %v319
        // Predicated region
        $region41: #{tpu_custom_call.1} parent=27 // pred_check
          %p321 = pneg %p223
        $region42: #{tpu_custom_call.1} parent=27 // pred_check_branch
          %323 = sbr.rel (%p321) target = $region44
        $region43: #{tpu_custom_call.1} parent=27 // pred_region
          %v324 = vld [vmem:[#allocation2] sm:$0x1]
          %v325 = vld [vmem:[#allocation3] sm:$0x1]
          %v326 = vsub.f32 %v325, %v324
          %v327 = vrcp.pop %v326
          %v328 = vmul.f32 %v326, %v327
          %v329 = vsub.f32 1.0, %v328
          %v330 = vmul.f32 %v327, %v329
          %v331 = vadd.f32 %v327, %v330
          %vm332 = vweird.f32 %v326
          %vm333 = vweird.f32 %v327
          %vm334 = vmor %vm332, %vm333
          %v335 = vsel %vm334, %v327, %v331
          %v336 = vand.u32 2147483647, %v326
          %vm337 = vcmp.eq.f32.partialorder %v336, 8.507059e+37
          %v338 = vand.u32 %v326, 2147483648
          %v339 = vor.u32 1.1754944e-38, %v338
          %v340 = vsel %vm337, %v339, %v335
          %v341 = vmul.f32 %v324, %v340
          %v342 = vsub.f32 1.0, %v341
          %343 = vst.msk [vmem:[%s220] sm:$0x1] %vm286, %v342
        $region44: #{tpu_custom_call.1} parent=27 // pred_fallthru
          _
        %s344 = sand.u32 %s98, 1
        %s345 = scalar_lea.sflag [#allocation6], %s344
        %s346 = sand.u32 %s98, 1
        %s347 = scalar_lea.vmem [#allocation9], %s346
        // Predicated region
        $region45: #{tpu_custom_call.1} parent=27 // pred_check
          %p348 = pneg %p108
        $region46: #{tpu_custom_call.1} parent=27 // pred_check_branch
          %350 = sbr.rel (%p348) target = $region48
        $region47: #{tpu_custom_call.1} parent=27 // pred_region
          %352 = vsyncadd %s345, 0
          %s353 = scalar_lea.hbm %s2, %s26
          %s355 = sshll.u32 %s347, 4
          %s356 = int_to_ptr.vmem [resolvable:$true] %s355
          %s357 = sshll.u32 %s353, 4
          %s358 = int_to_ptr.hbm [resolvable:$true] %s357
          %360 = dma.vmem_to_hbm [thread:$0]  %s356, 16, %s358, %s345
        $region48: #{tpu_custom_call.1} parent=27 // pred_fallthru
          _
      $region28: #{tpu_custom_call.1} parent=5 // pred_fallthru
        _
      %p361 = scmp.le.s32.totalorder 2, %s17
      // Predicated region
      $region49: #{tpu_custom_call.1} parent=5 // pred_check
        %p362 = pneg %p361
      $region50: #{tpu_custom_call.1} parent=5 // pred_check_branch
        %364 = sbr.rel (%p362) target = $region52
      $region51: #{tpu_custom_call.1} parent=5 // pred_region
        %s365 = ssub.s32 %s17, 2
        // Predicated region
        $region53: #{tpu_custom_call.1} parent=51 // pred_check
          %p366 = pneg %p114
        $region54: #{tpu_custom_call.1} parent=51 // pred_check_branch
          %368 = sbr.rel (%p366) target = $region56
        $region55: #{tpu_custom_call.1} parent=51 // pred_region
          %s369 = sand.u32 %s99, 1
          %s370 = scalar_lea.sflag [#allocation6], %s369
          %s371 = sand.u32 %s99, 1
          %s372 = scalar_lea.vmem [#allocation9], %s371
          %374 = dma.done %s370, 16
        $region56: #{tpu_custom_call.1} parent=51 // pred_fallthru
          _
      $region52: #{tpu_custom_call.1} parent=5 // pred_fallthru
        _
    $region6: #{tpu_custom_call.1} parent=1 // loop_footer
      %s21 = sadd.s32 1, %s17
    $region7: #{tpu_custom_call.1} parent=1 // loop_footer_branch
      %16 = sbr.rel target = $region3
    $region8: #{tpu_custom_call.1} parent=1 // loop_exit
      _
    %375 = vsyncpa [#allocation5], 1
    %s376 = scalar_lea.sflag [#allocation5], 1
    %377 = vsyncpa %s376, 1
    %378 = vsyncpa [#allocation8], 1
    %s379 = scalar_lea.sflag [#allocation8], 1
    %380 = vsyncpa %s379, 1
    %381 = vsyncpa [#allocation6], 1
    %s382 = scalar_lea.sflag [#allocation6], 1
    %383 = vsyncpa %s382, 1

</llo_original>
